<compile_context>
chip_gen: v7x
topology: tpu7x:2x2x1
jax: 0.10.0
libtpu: 0.0.40
codegen_flags: <defaults>
</compile_context>

<pallas_src>
import jax
import jax.numpy as jnp
from jax.experimental import pallas as pl
from jax.experimental.pallas import tpu as pltpu

LANE = 128                 # TPU lane width: batch elements map onto lanes
DEFAULT_BLOCK_ROWS = 1024  # plane rows per grid step (=> 1024*128 batch elems/step)


def _linear_kernel(wb_ref, x0_ref, x1_ref, o_ref):
    # wb_ref: (3,) f32 in SMEM = [w0, w1, b]
    # x0_ref / x1_ref / o_ref: (tile_r, 128) f32 in VMEM (lane-dense batch planes)
    w0 = wb_ref[0]
    w1 = wb_ref[1]
    b = wb_ref[2]
    # Pure VPU elementwise FMA-style compute; no MXU involvement.
    o_ref[...] = x0_ref[...] * w0 + x1_ref[...] * w1 + b


def net_forward(x, w, b, *, block_rows=DEFAULT_BLOCK_ROWS):
    """Pallas implementation of Net.forward: y = x @ w + b.

    x: (N, 2), w: (2, 1), b: (1, 1)  ->  y: (N, 1) float32
    """
    n, k = x.shape
    assert k == 2 and w.shape == (2, 1) and b.shape == (1, 1)
    assert block_rows % 8 == 0, "block_rows must be a sublane multiple"
    x = x.astype(jnp.float32)

    # Lane-dense plane geometry: batch index j -> (j // 128, j % 128).
    rows = pl.cdiv(n, LANE)
    tile_r = rows if rows <= block_rows else block_rows   # full extent or 8-multiple
    rows_pad = pl.cdiv(rows, tile_r) * tile_r
    n_full = rows_pad * LANE
    pad = n_full - n

    # Two lane-dense feature planes; only the ragged tail is padded.
    x0 = jnp.pad(x[:, 0], (0, pad)).reshape(rows_pad, LANE)
    x1 = jnp.pad(x[:, 1], (0, pad)).reshape(rows_pad, LANE)

    # Scalars [w0, w1, b] for SMEM.
    wb = jnp.concatenate([w.reshape(-1), b.reshape(-1)]).astype(jnp.float32)

    grid = (rows_pad // tile_r,)

    out = pl.pallas_call(
        _linear_kernel,
        out_shape=jax.ShapeDtypeStruct((rows_pad, LANE), jnp.float32),
        grid=grid,
        in_specs=[
            pl.BlockSpec(memory_space=pltpu.MemorySpace.SMEM),   # scalars, whole array
            pl.BlockSpec((tile_r, LANE), lambda i: (i, 0)),
            pl.BlockSpec((tile_r, LANE), lambda i: (i, 0)),
        ],
        out_specs=pl.BlockSpec((tile_r, LANE), lambda i: (i, 0)),
        compiler_params=pltpu.CompilerParams(
            dimension_semantics=("parallel",)),
    )(wb, x0, x1)

    # Undo the lane-dense reshape and drop the padded tail.
    return out.reshape(-1)[:n].reshape(n, 1)


if __name__ == "__main__":
    key = jax.random.PRNGKey(0)
    k_x1, k_w, k_x2, k_x3 = jax.random.split(key, 4)

    # Parameters with the same shapes/init style as the nn.Module.
    w = jax.random.normal(k_w, (2, 1), dtype=jnp.float32)   # torch.randn(2, 1)
    b = jnp.zeros((1, 1), dtype=jnp.float32)                # torch.zeros(1, 1)

    def check(x, **kwargs):
        y = jax.block_until_ready(net_forward(x, w, b, **kwargs))
        y_ref = x.astype(jnp.float32) @ w + b
        assert y.shape == (x.shape[0], 1)
        assert jnp.allclose(y, y_ref, atol=1e-5, rtol=1e-5)

    # Tiny batch (single (1,128) block).
    check(jax.random.normal(k_x1, (8, 2), dtype=jnp.float32))
    # Ragged batch (padding of the last partial lane row).
    check(jax.random.normal(k_x2, (300, 2), dtype=jnp.float32))
    # Multi-step grid + parallel axis + ragged tail (small block_rows to exercise it).
    check(jax.random.normal(k_x3, (2567, 2), dtype=jnp.float32), block_rows=8)

    print("KERNEL_OK")
</pallas_src>

<mosaic_0001>
module attributes {stable_mosaic.version = 11 : i64} {
  func.func @_linear_kernel(%arg0: i32, %arg1: memref<3xf32, #tpu.memory_space<smem>>, %arg2: memref<1x128xf32, #tpu.memory_space<vmem>>, %arg3: memref<1x128xf32, #tpu.memory_space<vmem>>, %arg4: memref<1x128xf32, #tpu.memory_space<vmem>>) attributes {dimension_semantics = [#tpu.dimension_semantics<parallel>], iteration_bounds = array<i64: 1>, scalar_prefetch = 0 : i64, scratch_operands = 0 : i64, tpu.core_type = #tpu.core_type<tc>, window_params = [{transform_indices = @transform_0, window_bounds = array<i64: 3>}, {transform_indices = @transform_1, window_bounds = array<i64: 1, 128>}, {transform_indices = @transform_2, window_bounds = array<i64: 1, 128>}, {transform_indices = @transform_3, window_bounds = array<i64: 1, 128>}]} {
    %c0 = arith.constant 0 : index
    %0 = memref.load %arg1[%c0] : memref<3xf32, #tpu.memory_space<smem>>
    %c1 = arith.constant 1 : index
    %1 = memref.load %arg1[%c1] : memref<3xf32, #tpu.memory_space<smem>>
    %c2 = arith.constant 2 : index
    %2 = memref.load %arg1[%c2] : memref<3xf32, #tpu.memory_space<smem>>
    %c0_0 = arith.constant 0 : index
    %c0_1 = arith.constant 0 : index
    %3 = vector.load %arg2[%c0_0, %c0_1] : memref<1x128xf32, #tpu.memory_space<vmem>>, vector<1x128xf32>
    %4 = vector.broadcast %0 : f32 to vector<1x128xf32>
    %5 = arith.mulf %3, %4 : vector<1x128xf32>
    %c0_2 = arith.constant 0 : index
    %c0_3 = arith.constant 0 : index
    %6 = vector.load %arg3[%c0_2, %c0_3] : memref<1x128xf32, #tpu.memory_space<vmem>>, vector<1x128xf32>
    %7 = vector.broadcast %1 : f32 to vector<1x128xf32>
    %8 = arith.mulf %6, %7 : vector<1x128xf32>
    %9 = arith.addf %5, %8 : vector<1x128xf32>
    %10 = vector.broadcast %2 : f32 to vector<1x128xf32>
    %11 = arith.addf %9, %10 : vector<1x128xf32>
    %c0_4 = arith.constant 0 : index
    %c0_5 = arith.constant 0 : index
    %12 = vector.load %arg4[%c0_4, %c0_5] : memref<1x128xf32, #tpu.memory_space<vmem>>, vector<1x128xf32>
    tpu.vector_store %arg4[%c0_4, %c0_5], %11 {strides = array<i32>} : memref<1x128xf32, #tpu.memory_space<vmem>>, vector<1x128xf32>,
    return
  }
  func.func @transform_0(%arg0: i32) -> i32 {
    %c0_i32 = arith.constant 0 : i32
    %c0_i32_0 = arith.constant 0 : i32
    return %c0_i32 : i32
  }
  func.func @transform_1(%arg0: i32) -> (i32, i32) {
    %c0_i32 = arith.constant 0 : i32
    %c0_i32_0 = arith.constant 0 : i32
    return %arg0, %c0_i32 : i32, i32
  }
  func.func @transform_2(%arg0: i32) -> (i32, i32) {
    %c0_i32 = arith.constant 0 : i32
    %c0_i32_0 = arith.constant 0 : i32
    return %arg0, %c0_i32 : i32, i32
  }
  func.func @transform_3(%arg0: i32) -> (i32, i32) {
    %c0_i32 = arith.constant 0 : i32
    %c0_i32_0 = arith.constant 0 : i32
    return %arg0, %c0_i32 : i32, i32
  }
}

</mosaic_0001>

<llo_original>
// kernel: tpu_custom_call.1
$region0: #{tpu_custom_call.1}
  #allocation0 [shape = 'u32[]', space=smem, size = 0x4, offset = 0x4, fixed_abs, tag = 'smem constant byte address 0x4 - core index']
  #allocation1 [shape = 'u32[144,128]{1,0:T(1,128)}', space=vmem, size = 0x12000, scoped, tag = 'internal scratch']
  %s0 = inlined_call_operand.hbm [shape: f32[3], index: 0, kind: input, shape index: {}]
  %s1 = inlined_call_operand.vmem [shape: f32[1,128], index: 1, kind: input, shape index: {}]
  %s2 = inlined_call_operand.vmem [shape: f32[1,128], index: 2, kind: input, shape index: {}]
  %s3 = inlined_call_operand.hbm [shape: f32[1,128], index: 3, kind: output, shape index: {}]
  %s4 = sld [smem:[#allocation0]]
  $region26: #{tpu_custom_call.1} parent=0
    _
  %s6 = ssub.s32 1, %s4
  %s7 = scalar_select 0, %s6, %s4
  $region1: #{tpu_custom_call.1} parent=0
    #allocation2 [shape = 'u8[512]{0}', space=smem, size = 0x200, scoped, tag = 'input window, operand 0, single buffered']
    #allocation3 [shape = 's32[1]{0}', space=sflag, size = 0x4, scoped, tag = 'scoped memory for tpu_custom_call.1']
    #allocation4 [shape = 's32[1]{0}', space=sflag, size = 0x4, scoped, tag = 'scoped memory for tpu_custom_call.1']
    #allocation5 [shape = 'u8[512]{0}', space=vmem, size = 0x400, scoped, tag = 'output window, operand 0, single buffered']
    %8 = vsyncpa [#allocation4], 0
    %9 = vsyncpa [#allocation3], 0
    // Predicated region
    $region2: #{tpu_custom_call.1} parent=1 // pred_check
      _
    $region3: #{tpu_custom_call.1} parent=1 // pred_check_branch
      %11 = sbr.rel (0) target = $region5
    $region4: #{tpu_custom_call.1} parent=1 // pred_region
      %s13 = ssub.s32 16, 16
      %14 = vsyncadd [#allocation4], %s13
      %17 = dma.hbm_to_smem %s0, 16, [#allocation2], [#allocation4]
    $region5: #{tpu_custom_call.1} parent=1 // pred_fallthru
      _
    // Predicated region
    $region6: #{tpu_custom_call.1} parent=1 // pred_check
      _
    $region7: #{tpu_custom_call.1} parent=1 // pred_check_branch
      %19 = sbr.rel (0) target = $region9
    $region8: #{tpu_custom_call.1} parent=1 // pred_region
      _
    $region9: #{tpu_custom_call.1} parent=1 // pred_fallthru
      _
    // Predicated region
    $region10: #{tpu_custom_call.1} parent=1 // pred_check
      _
    $region11: #{tpu_custom_call.1} parent=1 // pred_check_branch
      %21 = sbr.rel (0) target = $region13
    $region12: #{tpu_custom_call.1} parent=1 // pred_region
      _
    $region13: #{tpu_custom_call.1} parent=1 // pred_fallthru
      _
    // Predicated region
    $region14: #{tpu_custom_call.1} parent=1 // pred_check
      _
    $region15: #{tpu_custom_call.1} parent=1 // pred_check_branch
      %23 = sbr.rel (0) target = $region17
    $region16: #{tpu_custom_call.1} parent=1 // pred_region
      %24 = dma.done [#allocation4], 16
    $region17: #{tpu_custom_call.1} parent=1 // pred_fallthru
      _
    %25 = sfence
    %s26 = sld [smem:[#allocation2]]
    %s27 = sld [smem:[#allocation2 + $0x1]]
    %s28 = sld [smem:[#allocation2 + $0x2]]
    %v29 = vld [vmem:[%s1] sm:$0x1]
    %v30 = vstv %s26
    %v31 = vmul.f32 %v29, %v30
    %v32 = vld [vmem:[%s2] sm:$0x1]
    %v33 = vstv %s27
    %v34 = vmul.f32 %v32, %v33
    %v35 = vadd.f32 %v31, %v34
    %v36 = vstv %s28
    %v37 = vadd.f32 %v35, %v36
    %38 = vst [vmem:[#allocation5] sm:$0x1] %v37
    // Predicated region
    $region18: #{tpu_custom_call.1} parent=1 // pred_check
      _
    $region19: #{tpu_custom_call.1} parent=1 // pred_check_branch
      %40 = sbr.rel (0) target = $region21
    $region20: #{tpu_custom_call.1} parent=1 // pred_region
      %s42 = ssub.s32 16, 16
      %43 = vsyncadd [#allocation3], %s42
      %s45 = sshll.u32 [#allocation5], 4
      %s46 = int_to_ptr.vmem [resolvable:$true] %s45
      %48 = dma.vmem_to_hbm [thread:$0]  %s46, 16, %s3, [#allocation3]
    $region21: #{tpu_custom_call.1} parent=1 // pred_fallthru
      _
    // Predicated region
    $region22: #{tpu_custom_call.1} parent=1 // pred_check
      _
    $region23: #{tpu_custom_call.1} parent=1 // pred_check_branch
      %50 = sbr.rel (0) target = $region25
    $region24: #{tpu_custom_call.1} parent=1 // pred_region
      %51 = dma.done [#allocation3], 16
    $region25: #{tpu_custom_call.1} parent=1 // pred_fallthru
      _
    %52 = vsyncpa [#allocation3], 1
    %53 = vsyncpa [#allocation4], 1

</llo_original>
